<compile_context>
chip_gen: v7x
topology: tpu7x:2x2x1
jax: 0.10.0
libtpu: 0.0.40
codegen_flags: <defaults>
</compile_context>

<pallas_src>
import functools

import jax
import jax.numpy as jnp
from jax.experimental import pallas as pl
from jax.experimental.pallas import tpu as pltpu


def _round_up(x, m):
    return ((x + m - 1) // m) * m


def _sc_partial_kernel(x_ref, y_ref, out_ref, *, groups, group_rows):
    """Per-block partial L1 sums.

    x_ref, y_ref: (row_tile, F) VMEM tiles (row_tile = groups * group_rows).
    out_ref:      (1, 2*group_rows, F); rows [0, group_rows) accumulate
                  sum|y - x|, rows [group_rows, 2*group_rows) accumulate sum|y|.
    """
    f = x_ref.shape[-1]

    def body(g, carry):
        num_acc, den_acc = carry
        off = pl.multiple_of(g * group_rows, group_rows)
        x = x_ref[pl.ds(off, group_rows), :].astype(jnp.float32)
        y = y_ref[pl.ds(off, group_rows), :].astype(jnp.float32)
        num_acc = num_acc + jnp.abs(y - x)
        den_acc = den_acc + jnp.abs(y)
        return num_acc, den_acc

    zeros = jnp.zeros((group_rows, f), jnp.float32)
    num_acc, den_acc = jax.lax.fori_loop(
        0, groups, body, (zeros, zeros), unroll=min(groups, 8))

    out_ref[:, 0:group_rows, :] = num_acc.reshape(1, group_rows, f)
    out_ref[:, group_rows:, :] = den_acc.reshape(1, group_rows, f)


def _pure_jax_loss(x_mag, y_mag):
    x = x_mag.astype(jnp.float32)
    y = y_mag.astype(jnp.float32)
    return jnp.sum(jnp.abs(y - x)) / jnp.sum(jnp.abs(y))


@functools.partial(jax.jit, static_argnames=("row_tile_cap", "min_kernel_bytes"))
def spectral_convergence_loss(x_mag, y_mag, *, row_tile_cap=8192,
                              min_kernel_bytes=256 * 1024):
    """Spectral convergence loss: ||y_mag - x_mag||_1 / ||y_mag||_1.

    x_mag, y_mag: (B, #frames, #freq_bins) magnitude spectrograms.
    Returns a scalar float32. (||y||_1 == 0 gives inf/nan, like the reference.)
    """
    assert x_mag.shape == y_mag.shape, (x_mag.shape, y_mag.shape)
    B, T, F = x_mag.shape
    rows = B * T
    itemsize = jnp.dtype(x_mag.dtype).itemsize

    # ---- Tile sizing -------------------------------------------------------
    # Sublane granularity of the second-minor dim (8 rows f32, 16 rows bf16).
    sub = 8 * max(1, 4 // itemsize)
    lanes_pad = _round_up(F, 128)            # physical lane footprint per row
    tile_budget_bytes = 4 * 1024 * 1024      # per input, per pipeline buffer
    rows_cap = max(sub, ((tile_budget_bytes // (lanes_pad * itemsize)) // sub) * sub)
    rows_cap = min(rows_cap, max(sub, (row_tile_cap // sub) * sub))

    # Smallest even block count whose tiles fit the VMEM budget, so the
    # "parallel" grid axis splits evenly across v7x's two TensorCores.
    target_blocks = 2 * max(1, -(-rows // (2 * rows_cap)))
    row_tile = max(sub, ((rows // target_blocks) // sub) * sub)
    row_tile = min(row_tile, rows_cap)

    num_blocks = rows // row_tile            # full tiles only (no in-kernel mask)
    main_rows = num_blocks * row_tile
    tail_rows = rows - main_rows

    # ---- Tiny inputs: pure-JAX beats per-call / per-step overhead. ----------
    if num_blocks == 0 or rows * F * itemsize < min_kernel_bytes:
        return _pure_jax_loss(x_mag, y_mag)

    # Free reshape (merges leading dims only): no HBM relayout / copy.
    x2 = x_mag.reshape(rows, F)
    y2 = y_mag.reshape(rows, F)

    groups = row_tile // sub
    kernel = functools.partial(_sc_partial_kernel, groups=groups, group_rows=sub)

    out_bytes = num_blocks * 2 * sub * F * 4
    cost = pl.CostEstimate(
        flops=5 * main_rows * F,
        transcendentals=0,
        bytes_accessed=2 * main_rows * F * itemsize + out_bytes)

    partials = pl.pallas_call(
        kernel,
        out_shape=jax.ShapeDtypeStruct((num_blocks, 2 * sub, F), jnp.float32),
        grid_spec=pltpu.PrefetchScalarGridSpec(
            num_scalar_prefetch=0,
            grid=(num_blocks,),
            in_specs=[
                pl.BlockSpec((row_tile, F), lambda i: (i, 0)),
                pl.BlockSpec((row_tile, F), lambda i: (i, 0)),
            ],
            out_specs=pl.BlockSpec((1, 2 * sub, F), lambda i: (i, 0, 0)),
        ),
        compiler_params=pltpu.CompilerParams(
            dimension_semantics=("parallel",),
            vmem_limit_bytes=32 * 1024 * 1024,
        ),
        cost_estimate=cost,
    )(x2, y2)

    # ---- Tiny JAX epilogue: final reduction (+ ragged tail) + divide. -------
    num = jnp.sum(partials[:, :sub, :], dtype=jnp.float32)
    den = jnp.sum(partials[:, sub:, :], dtype=jnp.float32)

    if tail_rows:
        xt = x2[main_rows:, :].astype(jnp.float32)
        yt = y2[main_rows:, :].astype(jnp.float32)
        num = num + jnp.sum(jnp.abs(yt - xt))
        den = den + jnp.sum(jnp.abs(yt))

    return num / den


if __name__ == "__main__":
    key = jax.random.PRNGKey(0)
    kx, ky = jax.random.split(key)

    # Small magnitude-spectrogram-like inputs: (batch, #frames, #freq_bins).
    B, T, F = 2, 120, 80
    x_mag = jnp.abs(jax.random.normal(kx, (B, T, F), dtype=jnp.float32))
    y_mag = jnp.abs(jax.random.normal(ky, (B, T, F), dtype=jnp.float32))

    # Force the Pallas path even at this small size: multi-block grid
    # (4 full blocks of 56 rows) + a 16-row ragged tail handled in the epilogue.
    loss = spectral_convergence_loss(x_mag, y_mag, row_tile_cap=64,
                                     min_kernel_bytes=0)
    loss = jax.block_until_ready(loss)
    ref = jnp.sum(jnp.abs(y_mag - x_mag)) / jnp.sum(jnp.abs(y_mag))
    assert jnp.allclose(loss, ref, rtol=1e-5, atol=1e-6), (loss, ref)

    # Default configuration on a tiny input (exercises the pure-JAX bypass).
    B2, T2 = 2, 8
    x_small = jnp.abs(jax.random.normal(kx, (B2, T2, F), dtype=jnp.float32))
    y_small = jnp.abs(jax.random.normal(ky, (B2, T2, F), dtype=jnp.float32))
    loss2 = jax.block_until_ready(spectral_convergence_loss(x_small, y_small))
    ref2 = jnp.sum(jnp.abs(y_small - x_small)) / jnp.sum(jnp.abs(y_small))
    assert jnp.allclose(loss2, ref2, rtol=1e-5, atol=1e-6), (loss2, ref2)

    print("KERNEL_OK")
</pallas_src>

<mosaic_0001>
module attributes {stable_mosaic.version = 11 : i64} {
  func.func @_sc_partial_kernel(%arg0: i32, %arg1: memref<56x80xf32, #tpu.memory_space<vmem>>, %arg2: memref<56x80xf32, #tpu.memory_space<vmem>>, %arg3: memref<1x16x80xf32, #tpu.memory_space<vmem>>) attributes {dimension_semantics = [#tpu.dimension_semantics<parallel>], iteration_bounds = array<i64: 4>, scalar_prefetch = 0 : i64, scratch_operands = 0 : i64, tpu.core_type = #tpu.core_type<tc>, window_params = [{transform_indices = @transform_0, window_bounds = array<i64: 56, 80>}, {transform_indices = @transform_1, window_bounds = array<i64: 56, 80>}, {transform_indices = @transform_2, window_bounds = array<i64: 1, 16, 80>}]} {
    %cst = arith.constant 0.000000e+00 : f32
    %0 = vector.broadcast %cst : f32 to vector<8x80xf32>
    %c0_i32 = arith.constant 0 : i32
    %c8_i32 = arith.constant 8 : i32
    %1 = arith.muli %c0_i32, %c8_i32 : i32
    %2 = tpu.assume_multiple %1, 8 : i32
    %3 = arith.index_cast %2 : i32 to index
    %c0 = arith.constant 0 : index
    %4 = vector.load %arg1[%3, %c0] : memref<56x80xf32, #tpu.memory_space<vmem>>, vector<8x80xf32>
    %5 = arith.index_cast %2 : i32 to index
    %c0_0 = arith.constant 0 : index
    %6 = vector.load %arg2[%5, %c0_0] : memref<56x80xf32, #tpu.memory_space<vmem>>, vector<8x80xf32>
    %7 = arith.subf %6, %4 : vector<8x80xf32>
    %8 = math.absf %7 : vector<8x80xf32>
    %9 = arith.addf %0, %8 : vector<8x80xf32>
    %10 = math.absf %6 : vector<8x80xf32>
    %11 = arith.addf %0, %10 : vector<8x80xf32>
    %c1_i32 = arith.constant 1 : i32
    %c8_i32_1 = arith.constant 8 : i32
    %12 = arith.muli %c1_i32, %c8_i32_1 : i32
    %13 = tpu.assume_multiple %12, 8 : i32
    %14 = arith.index_cast %13 : i32 to index
    %c0_2 = arith.constant 0 : index
    %15 = vector.load %arg1[%14, %c0_2] : memref<56x80xf32, #tpu.memory_space<vmem>>, vector<8x80xf32>
    %16 = arith.index_cast %13 : i32 to index
    %c0_3 = arith.constant 0 : index
    %17 = vector.load %arg2[%16, %c0_3] : memref<56x80xf32, #tpu.memory_space<vmem>>, vector<8x80xf32>
    %18 = arith.subf %17, %15 : vector<8x80xf32>
    %19 = math.absf %18 : vector<8x80xf32>
    %20 = arith.addf %9, %19 : vector<8x80xf32>
    %21 = math.absf %17 : vector<8x80xf32>
    %22 = arith.addf %11, %21 : vector<8x80xf32>
    %c2_i32 = arith.constant 2 : i32
    %c8_i32_4 = arith.constant 8 : i32
    %23 = arith.muli %c2_i32, %c8_i32_4 : i32
    %24 = tpu.assume_multiple %23, 8 : i32
    %25 = arith.index_cast %24 : i32 to index
    %c0_5 = arith.constant 0 : index
    %26 = vector.load %arg1[%25, %c0_5] : memref<56x80xf32, #tpu.memory_space<vmem>>, vector<8x80xf32>
    %27 = arith.index_cast %24 : i32 to index
    %c0_6 = arith.constant 0 : index
    %28 = vector.load %arg2[%27, %c0_6] : memref<56x80xf32, #tpu.memory_space<vmem>>, vector<8x80xf32>
    %29 = arith.subf %28, %26 : vector<8x80xf32>
    %30 = math.absf %29 : vector<8x80xf32>
    %31 = arith.addf %20, %30 : vector<8x80xf32>
    %32 = math.absf %28 : vector<8x80xf32>
    %33 = arith.addf %22, %32 : vector<8x80xf32>
    %c3_i32 = arith.constant 3 : i32
    %c8_i32_7 = arith.constant 8 : i32
    %34 = arith.muli %c3_i32, %c8_i32_7 : i32
    %35 = tpu.assume_multiple %34, 8 : i32
    %36 = arith.index_cast %35 : i32 to index
    %c0_8 = arith.constant 0 : index
    %37 = vector.load %arg1[%36, %c0_8] : memref<56x80xf32, #tpu.memory_space<vmem>>, vector<8x80xf32>
    %38 = arith.index_cast %35 : i32 to index
    %c0_9 = arith.constant 0 : index
    %39 = vector.load %arg2[%38, %c0_9] : memref<56x80xf32, #tpu.memory_space<vmem>>, vector<8x80xf32>
    %40 = arith.subf %39, %37 : vector<8x80xf32>
    %41 = math.absf %40 : vector<8x80xf32>
    %42 = arith.addf %31, %41 : vector<8x80xf32>
    %43 = math.absf %39 : vector<8x80xf32>
    %44 = arith.addf %33, %43 : vector<8x80xf32>
    %c4_i32 = arith.constant 4 : i32
    %c8_i32_10 = arith.constant 8 : i32
    %45 = arith.muli %c4_i32, %c8_i32_10 : i32
    %46 = tpu.assume_multiple %45, 8 : i32
    %47 = arith.index_cast %46 : i32 to index
    %c0_11 = arith.constant 0 : index
    %48 = vector.load %arg1[%47, %c0_11] : memref<56x80xf32, #tpu.memory_space<vmem>>, vector<8x80xf32>
    %49 = arith.index_cast %46 : i32 to index
    %c0_12 = arith.constant 0 : index
    %50 = vector.load %arg2[%49, %c0_12] : memref<56x80xf32, #tpu.memory_space<vmem>>, vector<8x80xf32>
    %51 = arith.subf %50, %48 : vector<8x80xf32>
    %52 = math.absf %51 : vector<8x80xf32>
    %53 = arith.addf %42, %52 : vector<8x80xf32>
    %54 = math.absf %50 : vector<8x80xf32>
    %55 = arith.addf %44, %54 : vector<8x80xf32>
    %c5_i32 = arith.constant 5 : i32
    %c8_i32_13 = arith.constant 8 : i32
    %56 = arith.muli %c5_i32, %c8_i32_13 : i32
    %57 = tpu.assume_multiple %56, 8 : i32
    %58 = arith.index_cast %57 : i32 to index
    %c0_14 = arith.constant 0 : index
    %59 = vector.load %arg1[%58, %c0_14] : memref<56x80xf32, #tpu.memory_space<vmem>>, vector<8x80xf32>
    %60 = arith.index_cast %57 : i32 to index
    %c0_15 = arith.constant 0 : index
    %61 = vector.load %arg2[%60, %c0_15] : memref<56x80xf32, #tpu.memory_space<vmem>>, vector<8x80xf32>
    %62 = arith.subf %61, %59 : vector<8x80xf32>
    %63 = math.absf %62 : vector<8x80xf32>
    %64 = arith.addf %53, %63 : vector<8x80xf32>
    %65 = math.absf %61 : vector<8x80xf32>
    %66 = arith.addf %55, %65 : vector<8x80xf32>
    %c6_i32 = arith.constant 6 : i32
    %c8_i32_16 = arith.constant 8 : i32
    %67 = arith.muli %c6_i32, %c8_i32_16 : i32
    %68 = tpu.assume_multiple %67, 8 : i32
    %69 = arith.index_cast %68 : i32 to index
    %c0_17 = arith.constant 0 : index
    %70 = vector.load %arg1[%69, %c0_17] : memref<56x80xf32, #tpu.memory_space<vmem>>, vector<8x80xf32>
    %71 = arith.index_cast %68 : i32 to index
    %c0_18 = arith.constant 0 : index
    %72 = vector.load %arg2[%71, %c0_18] : memref<56x80xf32, #tpu.memory_space<vmem>>, vector<8x80xf32>
    %73 = arith.subf %72, %70 : vector<8x80xf32>
    %74 = math.absf %73 : vector<8x80xf32>
    %75 = arith.addf %64, %74 : vector<8x80xf32>
    %76 = math.absf %72 : vector<8x80xf32>
    %77 = arith.addf %66, %76 : vector<8x80xf32>
    %c7_i32 = arith.constant 7 : i32
    %78 = vector.shape_cast %75 : vector<8x80xf32> to vector<1x8x80xf32>
    %c0_19 = arith.constant 0 : index
    %c0_20 = arith.constant 0 : index
    %c0_21 = arith.constant 0 : index
    %79 = vector.load %arg3[%c0_19, %c0_20, %c0_21] : memref<1x16x80xf32, #tpu.memory_space<vmem>>, vector<1x8x80xf32>
    tpu.vector_store %arg3[%c0_19, %c0_20, %c0_21], %78 {strides = array<i32>} : memref<1x16x80xf32, #tpu.memory_space<vmem>>, vector<1x8x80xf32>,
    %80 = vector.shape_cast %77 : vector<8x80xf32> to vector<1x8x80xf32>
    %c0_22 = arith.constant 0 : index
    %c8 = arith.constant 8 : index
    %c0_23 = arith.constant 0 : index
    %81 = vector.load %arg3[%c0_22, %c8, %c0_23] : memref<1x16x80xf32, #tpu.memory_space<vmem>>, vector<1x8x80xf32>
    tpu.vector_store %arg3[%c0_22, %c8, %c0_23], %80 {strides = array<i32>} : memref<1x16x80xf32, #tpu.memory_space<vmem>>, vector<1x8x80xf32>,
    return
  }
  func.func @transform_0(%arg0: i32) -> (i32, i32) {
    %c0_i32 = arith.constant 0 : i32
    %c0_i32_0 = arith.constant 0 : i32
    return %arg0, %c0_i32 : i32, i32
  }
  func.func @transform_1(%arg0: i32) -> (i32, i32) {
    %c0_i32 = arith.constant 0 : i32
    %c0_i32_0 = arith.constant 0 : i32
    return %arg0, %c0_i32 : i32, i32
  }
  func.func @transform_2(%arg0: i32) -> (i32, i32, i32) {
    %c0_i32 = arith.constant 0 : i32
    %c0_i32_0 = arith.constant 0 : i32
    %c0_i32_1 = arith.constant 0 : i32
    return %arg0, %c0_i32, %c0_i32_0 : i32, i32, i32
  }
}

</mosaic_0001>

<llo_original>
// kernel: spectral_convergence_loss.1
$region0: #{spectral_convergence_loss.1}
  #allocation0 [shape = 'u32[]', space=smem, size = 0x4, offset = 0x4, fixed_abs, tag = 'smem constant byte address 0x4 - core index']
  #allocation1 [shape = 'u32[144,128]{1,0:T(1,128)}', space=vmem, size = 0x12000, scoped, tag = 'internal scratch']
  %s0 = inlined_call_operand.vmem [shape: f32[240,80], index: 0, kind: input, shape index: {}]
  %s1 = inlined_call_operand.vmem [shape: f32[240,80], index: 1, kind: input, shape index: {}]
  %s2 = inlined_call_operand.vmem [shape: f32[4,16,80], index: 2, kind: output, shape index: {}]
  %s3 = sld [smem:[#allocation0]]
  $region41: #{spectral_convergence_loss.1} parent=0
    _
  %s5 = ssub.s32 1, %s3
  %s6 = scalar_select 0, %s5, %s3
  loop: start=0, step=1, limit=6
  $region2: #{spectral_convergence_loss.1} parent=0 // loop_pre_header
    _
  $region3: #{spectral_convergence_loss.1} parent=0 // loop_header
    %s8 = sphi 0, %s12
    %p9 = scmp.ge.s32.totalorder %s8, 6
    %s18 = sphi 0, %s20
    %s21 = sphi 0, %s18
    %s22 = sphi 0, %s21
    %s38 = sphi 0, %s22
    %s44 = sphi 0, %s46
    %s47 = sphi 0, %s44
    %s48 = sphi 0, %s47
    %s64 = sphi 0, %s48
    %s70 = sphi 0, %s72
    %s73 = sphi 0, %s70
    %s74 = sphi 0, %s73
    %s90 = sphi 0, %s74
  $region4: #{spectral_convergence_loss.1} parent=0 // loop_header_branch
    %11 = sbr.rel (%p9) target = $region8
  $region5: #{spectral_convergence_loss.1} parent=0 // loop_body
    %s13 = ssub.s32 %s8, 1
    %s14 = ssub.s32 %s8, 2
    %s15 = sadd.s32 %s8, 1
    %s16 = ssub.s32 %s8, %s15
    %p17 = scmp.eq.s32.totalorder %s16, 0
    %s19 = sadd.s32 %s18, 1
    %s20 = scalar_select %p17, %s18, %s19
    %p23 = pneg %p17
    %p24 = scmp.eq.s32.totalorder %s8, 3
    %p25 = por %p23, %p24
    %p26 = scmp.ne.s32.totalorder %s18, %s21
    %p27 = scmp.eq.s32.totalorder %s8, 0
    %p28 = por %p26, %p27
    %p29 = scmp.ne.s32.totalorder %s18, %s21
    %p30 = scmp.eq.s32.totalorder %s13, 3
    %p31 = por %p29, %p30
    %p32 = scmp.ne.s32.totalorder %s21, %s22
    %p33 = scmp.eq.s32.totalorder %s13, 0
    %p34 = por %p32, %p33
    %p35 = scmp.ne.s32.totalorder %s21, %s22
    %p36 = scmp.eq.s32.totalorder %s14, 3
    %p37 = por %p35, %p36
    %p39 = scmp.ne.s32.totalorder %s22, %s38
    %p40 = scmp.eq.s32.totalorder %s14, 0
    %p41 = por %p39, %p40
    %s42 = ssub.s32 %s8, %s15
    %p43 = scmp.eq.s32.totalorder %s42, 0
    %s45 = sadd.s32 %s44, 1
    %s46 = scalar_select %p43, %s44, %s45
    %p49 = pneg %p43
    %p50 = scmp.eq.s32.totalorder %s8, 3
    %p51 = por %p49, %p50
    %p52 = scmp.ne.s32.totalorder %s44, %s47
    %p53 = scmp.eq.s32.totalorder %s8, 0
    %p54 = por %p52, %p53
    %p55 = scmp.ne.s32.totalorder %s44, %s47
    %p56 = scmp.eq.s32.totalorder %s13, 3
    %p57 = por %p55, %p56
    %p58 = scmp.ne.s32.totalorder %s47, %s48
    %p59 = scmp.eq.s32.totalorder %s13, 0
    %p60 = por %p58, %p59
    %p61 = scmp.ne.s32.totalorder %s47, %s48
    %p62 = scmp.eq.s32.totalorder %s14, 3
    %p63 = por %p61, %p62
    %p65 = scmp.ne.s32.totalorder %s48, %s64
    %p66 = scmp.eq.s32.totalorder %s14, 0
    %p67 = por %p65, %p66
    %s68 = ssub.s32 %s8, %s15
    %p69 = scmp.eq.s32.totalorder %s68, 0
    %s71 = sadd.s32 %s70, 1
    %s72 = scalar_select %p69, %s70, %s71
    %p75 = pneg %p69
    %p76 = scmp.eq.s32.totalorder %s8, 3
    %p77 = por %p75, %p76
    %p78 = scmp.ne.s32.totalorder %s70, %s73
    %p79 = scmp.eq.s32.totalorder %s8, 0
    %p80 = por %p78, %p79
    %p81 = scmp.ne.s32.totalorder %s70, %s73
    %p82 = scmp.eq.s32.totalorder %s13, 3
    %p83 = por %p81, %p82
    %p84 = scmp.ne.s32.totalorder %s73, %s74
    %p85 = scmp.eq.s32.totalorder %s13, 0
    %p86 = por %p84, %p85
    %p87 = scmp.ne.s32.totalorder %s73, %s74
    %p88 = scmp.eq.s32.totalorder %s14, 3
    %p89 = por %p87, %p88
    %p91 = scmp.ne.s32.totalorder %s74, %s90
    %p92 = scmp.eq.s32.totalorder %s14, 0
    %p93 = por %p91, %p92
    %p94 = scmp.le.s32.totalorder 1, %s8
    %p95 = scmp.lt.s32.totalorder %s8, 5
    %p96 = pnand %p94, %p95
    %p97 = pneg %p96
    // Predicated region
    $region9: #{spectral_convergence_loss.1} parent=5 // pred_check
      _
    $region10: #{spectral_convergence_loss.1} parent=5 // pred_check_branch
      %99 = sbr.rel (%p96) target = $region12
    $region11: #{spectral_convergence_loss.1} parent=5 // pred_region
      %s100 = ssub.s32 %s8, 1
    $region12: #{spectral_convergence_loss.1} parent=5 // pred_fallthru
      _
    %p101 = scmp.lt.s32.totalorder %s8, 4
    // Predicated region
    $region13: #{spectral_convergence_loss.1} parent=5 // pred_check
      %p102 = pneg %p101
    $region14: #{spectral_convergence_loss.1} parent=5 // pred_check_branch
      %104 = sbr.rel (%p102) target = $region16
    $region15: #{spectral_convergence_loss.1} parent=5 // pred_region
      // Predicated region
      $region17: #{spectral_convergence_loss.1} parent=15 // pred_check
        %p105 = pneg %p28
      $region18: #{spectral_convergence_loss.1} parent=15 // pred_check_branch
        %107 = sbr.rel (%p105) target = $region20
      $region19: #{spectral_convergence_loss.1} parent=15 // pred_region
        %s108 = smul.u32 7, %s8
        %s109 = ssub.s32 30, %s108
        %p110 = scmp.lt.s32.totalorder %s109, 7
        %s111 = scalar_select %p110, %s109, 7
        %s112 = smul.u32 128, %s111
        %p113 = scmp.lt.s32.totalorder %s108, 29
        %s114 = scalar_select %p113, %s108, 29
        %s115 = smul.addr %s114, 8
        %s116 = scalar_lea.vmem %s0, %s115
        %s117 = smul.u32 7, %s8
        %s118 = ssub.s32 30, %s117
        %p119 = scmp.lt.s32.totalorder %s118, 7
        %s120 = scalar_select %p119, %s118, 7
        %s121 = smul.u32 128, %s120
      $region20: #{spectral_convergence_loss.1} parent=15 // pred_fallthru
        _
      // Predicated region
      $region21: #{spectral_convergence_loss.1} parent=15 // pred_check
        %p122 = pneg %p54
      $region22: #{spectral_convergence_loss.1} parent=15 // pred_check_branch
        %124 = sbr.rel (%p122) target = $region24
      $region23: #{spectral_convergence_loss.1} parent=15 // pred_region
        %s125 = smul.u32 7, %s8
        %s126 = ssub.s32 30, %s125
        %p127 = scmp.lt.s32.totalorder %s126, 7
        %s128 = scalar_select %p127, %s126, 7
        %s129 = smul.u32 128, %s128
        %p130 = scmp.lt.s32.totalorder %s125, 29
        %s131 = scalar_select %p130, %s125, 29
        %s132 = smul.addr %s131, 8
        %s133 = scalar_lea.vmem %s1, %s132
        %s134 = smul.u32 7, %s8
        %s135 = ssub.s32 30, %s134
        %p136 = scmp.lt.s32.totalorder %s135, 7
        %s137 = scalar_select %p136, %s135, 7
        %s138 = smul.u32 128, %s137
      $region24: #{spectral_convergence_loss.1} parent=15 // pred_fallthru
        _
    $region16: #{spectral_convergence_loss.1} parent=5 // pred_fallthru
      _
    %p139 = scmp.le.s32.totalorder 1, %s8
    %p140 = scmp.lt.s32.totalorder %s8, 5
    %p141 = pnand %p139, %p140
    %p142 = pneg %p141
    // Predicated region
    $region25: #{spectral_convergence_loss.1} parent=5 // pred_check
      _
    $region26: #{spectral_convergence_loss.1} parent=5 // pred_check_branch
      %144 = sbr.rel (%p141) target = $region28
    $region27: #{spectral_convergence_loss.1} parent=5 // pred_region
      %s145 = ssub.s32 %s8, 1
      %s146 = smul.u32 7, %s13
      %s147 = ssub.s32 30, %s146
      %p148 = scmp.lt.s32.totalorder %s147, 7
      %s149 = scalar_select %p148, %s147, 7
      %s150 = smul.u32 128, %s149
      %p151 = scmp.lt.s32.totalorder %s146, 29
      %s152 = scalar_select %p151, %s146, 29
      %s153 = smul.addr %s152, 8
      %s154 = scalar_lea.vmem %s0, %s153
      %p155 = pneg %p34
      %p156 = pneg %p31
      %s157 = smul.u32 7, %s13
      %s158 = ssub.s32 30, %s157
      %p159 = scmp.lt.s32.totalorder %s158, 7
      %s160 = scalar_select %p159, %s158, 7
      %s161 = smul.u32 128, %s160
      %p162 = scmp.lt.s32.totalorder %s157, 29
      %s163 = scalar_select %p162, %s157, 29
      %s164 = smul.addr %s163, 8
      %s165 = scalar_lea.vmem %s1, %s164
      %p166 = pneg %p60
      %p167 = pneg %p57
      %p168 = pneg %p86
      %p169 = pneg %p83
      %p170 = scmp.lt.s32.totalorder %s13, 3
      %s171 = scalar_select %p170, %s13, 3
      %s172 = smul.addr %s171, 2
      %s173 = smul.addr %s172, 8
      %s174 = scalar_lea.vmem %s2, %s173
      %s175 = smul.u32 7, %s13
      %s176 = ssub.s32 30, %s175
      %p177 = scmp.lt.s32.totalorder %s176, 7
      %s178 = scalar_select %p177, %s176, 7
      %s179 = smul.u32 128, %s178
      %p180 = scmp.lt.s32.totalorder %s175, 29
      %s181 = scalar_select %p180, %s175, 29
      %s182 = smul.addr %s181, 8
      %s183 = scalar_lea.vmem %s0, %s182
      %s184 = smul.u32 7, %s13
      %s185 = ssub.s32 30, %s184
      %p186 = scmp.lt.s32.totalorder %s185, 7
      %s187 = scalar_select %p186, %s185, 7
      %s188 = smul.u32 128, %s187
      %s189 = smul.u32 7, %s13
      %s190 = ssub.s32 30, %s189
      %p191 = scmp.lt.s32.totalorder %s190, 7
      %s192 = scalar_select %p191, %s190, 7
      %s193 = smul.u32 128, %s192
      %p194 = scmp.lt.s32.totalorder %s189, 29
      %s195 = scalar_select %p194, %s189, 29
      %s196 = smul.addr %s195, 8
      %s197 = scalar_lea.vmem %s1, %s196
      %s198 = smul.u32 7, %s13
      %s199 = ssub.s32 30, %s198
      %p200 = scmp.lt.s32.totalorder %s199, 7
      %s201 = scalar_select %p200, %s199, 7
      %s202 = smul.u32 128, %s201
      %p203 = scmp.lt.s32.totalorder %s13, 3
      %s204 = scalar_select %p203, %s13, 3
      %s205 = smul.addr %s204, 2
      %s206 = smul.addr %s205, 8
      %s207 = scalar_lea.vmem %s2, %s206
      %v208 = vld [vmem:[%s183] sm:$0xff]
      %v209 = vld [vmem:[%s197] sm:$0xff]
      %v210 = vsub.f32 %v209, %v208
      %v211 = vand.u32 2147483647, %v210
      %v212 = vadd.f32 %v211, 0.0
      %v213 = vand.u32 2147483647, %v209
      %v214 = vadd.f32 %v213, 0.0
      %s215 = scalar_lea.vmem %s183, 8
      %v216 = vld [vmem:[%s215] sm:$0xff]
      %s217 = scalar_lea.vmem %s197, 8
      %v218 = vld [vmem:[%s217] sm:$0xff]
      %v219 = vsub.f32 %v218, %v216
      %v220 = vand.u32 2147483647, %v219
      %v221 = vadd.f32 %v212, %v220
      %v222 = vand.u32 2147483647, %v218
      %v223 = vadd.f32 %v214, %v222
      %s224 = scalar_lea.vmem %s183, 16
      %v225 = vld [vmem:[%s224] sm:$0xff]
      %s226 = scalar_lea.vmem %s197, 16
      %v227 = vld [vmem:[%s226] sm:$0xff]
      %v228 = vsub.f32 %v227, %v225
      %v229 = vand.u32 2147483647, %v228
      %v230 = vadd.f32 %v221, %v229
      %v231 = vand.u32 2147483647, %v227
      %v232 = vadd.f32 %v223, %v231
      %s233 = scalar_lea.vmem %s183, 24
      %v234 = vld [vmem:[%s233] sm:$0xff]
      %s235 = scalar_lea.vmem %s197, 24
      %v236 = vld [vmem:[%s235] sm:$0xff]
      %v237 = vsub.f32 %v236, %v234
      %v238 = vand.u32 2147483647, %v237
      %v239 = vadd.f32 %v230, %v238
      %v240 = vand.u32 2147483647, %v236
      %v241 = vadd.f32 %v232, %v240
      %s242 = scalar_lea.vmem %s183, 32
      %v243 = vld [vmem:[%s242] sm:$0xff]
      %s244 = scalar_lea.vmem %s197, 32
      %v245 = vld [vmem:[%s244] sm:$0xff]
      %v246 = vsub.f32 %v245, %v243
      %v247 = vand.u32 2147483647, %v246
      %v248 = vadd.f32 %v239, %v247
      %v249 = vand.u32 2147483647, %v245
      %v250 = vadd.f32 %v241, %v249
      %s251 = scalar_lea.vmem %s183, 40
      %v252 = vld [vmem:[%s251] sm:$0xff]
      %s253 = scalar_lea.vmem %s197, 40
      %v254 = vld [vmem:[%s253] sm:$0xff]
      %v255 = vsub.f32 %v254, %v252
      %v256 = vand.u32 2147483647, %v255
      %v257 = vadd.f32 %v248, %v256
      %v258 = vand.u32 2147483647, %v254
      %v259 = vadd.f32 %v250, %v258
      %s260 = scalar_lea.vmem %s183, 48
      %v261 = vld [vmem:[%s260] sm:$0xff]
      %s262 = scalar_lea.vmem %s197, 48
      %v263 = vld [vmem:[%s262] sm:$0xff]
      %v264 = vsub.f32 %v263, %v261
      %v265 = vand.u32 2147483647, %v264
      %v266 = vadd.f32 %v257, %v265
      %v267 = vand.u32 2147483647, %v263
      %v268 = vadd.f32 %v259, %v267
      %vm269 = vcmask 654336
      %270 = vst.msk [vmem:[%s207] sm:$0xff] %vm269, %v266
      %271 = vst.msk [vmem:[%s207 + $0x8] sm:$0xff] %vm269, %v268
      %p272 = scmp.lt.s32.totalorder %s13, 3
      %s273 = scalar_select %p272, %s13, 3
      %s274 = smul.addr %s273, 2
      %s275 = smul.addr %s274, 8
      %s276 = scalar_lea.vmem %s2, %s275
      // Predicated region
      $region29: #{spectral_convergence_loss.1} parent=27 // pred_check
        %p277 = pneg %p83
      $region30: #{spectral_convergence_loss.1} parent=27 // pred_check_branch
        %279 = sbr.rel (%p277) target = $region32
      $region31: #{spectral_convergence_loss.1} parent=27 // pred_region
        _
      $region32: #{spectral_convergence_loss.1} parent=27 // pred_fallthru
        _
    $region28: #{spectral_convergence_loss.1} parent=5 // pred_fallthru
      _
    %p280 = scmp.le.s32.totalorder 2, %s8
    // Predicated region
    $region33: #{spectral_convergence_loss.1} parent=5 // pred_check
      %p281 = pneg %p280
    $region34: #{spectral_convergence_loss.1} parent=5 // pred_check_branch
      %283 = sbr.rel (%p281) target = $region36
    $region35: #{spectral_convergence_loss.1} parent=5 // pred_region
      %s284 = ssub.s32 %s8, 2
      // Predicated region
      $region37: #{spectral_convergence_loss.1} parent=35 // pred_check
        %p285 = pneg %p89
      $region38: #{spectral_convergence_loss.1} parent=35 // pred_check_branch
        %287 = sbr.rel (%p285) target = $region40
      $region39: #{spectral_convergence_loss.1} parent=35 // pred_region
        %p288 = scmp.lt.s32.totalorder %s14, 3
        %s289 = scalar_select %p288, %s14, 3
        %s290 = smul.addr %s289, 2
        %s291 = smul.addr %s290, 8
        %s292 = scalar_lea.vmem %s2, %s291
      $region40: #{spectral_convergence_loss.1} parent=35 // pred_fallthru
        _
    $region36: #{spectral_convergence_loss.1} parent=5 // pred_fallthru
      _
  $region6: #{spectral_convergence_loss.1} parent=0 // loop_footer
    %s12 = sadd.s32 1, %s8
  $region7: #{spectral_convergence_loss.1} parent=0 // loop_footer_branch
    %7 = sbr.rel target = $region3
  $region8: #{spectral_convergence_loss.1} parent=0 // loop_exit
    _

</llo_original>
